<compile_context>
chip_gen: v5e
topology: v5e:2x2
jax: 0.10.0
libtpu: 0.0.40
codegen_flags: <defaults>
</compile_context>

<pallas_src>
import functools

import jax
import jax.numpy as jnp
from jax.experimental import pallas as pl
from jax.experimental.pallas import tpu as pltpu

LANE = 128
BF16_SUBLANE = 16  # bf16 packs 16 rows per vreg sublane group


def _round_up(x, m):
    return (x + m - 1) // m * m


# ---------------------------------------------------------------------------
# Kernel
# ---------------------------------------------------------------------------
def _activation(x, kind):
    if kind == "relu":
        return jnp.maximum(x, 0.0)
    if kind == "tanh":
        return jnp.tanh(x)
    if kind == "selu":
        alpha = 1.6732632423543772
        scale = 1.0507009873554805
        return scale * jnp.where(x > 0, x, alpha * (jnp.exp(x) - 1.0))
    if kind == "elu":
        return jnp.where(x > 0, x, jnp.exp(x) - 1.0)
    # PyTorch module adds no activation for unknown kinds.
    return x


def _mlp_kernel(x_ref, *refs, num_hidden, activation):
    """Fused MLP forward for one (TB, D) batch tile.

    refs = (w0, b0, w1, b1, ..., wL, bL, out_ref)  with L = num_hidden
    (last (w, b) pair is the `softmax_layer` Linear; no activation after it).
    Weights are bf16 (in, out); biases are f32 (1, out); x is bf16.
    """
    out_ref = refs[-1]
    params = refs[:-1]

    h = x_ref[...]                      # bf16 (TB, D)
    for i in range(num_hidden + 1):
        w = params[2 * i][...]          # bf16 (in, out)
        b = params[2 * i + 1][...]      # f32  (1, out)
        # bf16 MXU inputs, f32 accumulation; bias add / activation in f32 (VPU).
        h = jnp.dot(h.astype(jnp.bfloat16), w,
                    preferred_element_type=jnp.float32) + b
        if i < num_hidden:
            h = _activation(h, activation)
    out_ref[...] = h.astype(out_ref.dtype)


# ---------------------------------------------------------------------------
# One-time parameter preparation (hoisted out of the per-forward path)
# ---------------------------------------------------------------------------
def prepare_params(weights, biases):
    """Cast weights to bf16 (in, out) and biases to f32 (1, out) once."""
    ws = [jnp.asarray(w, jnp.bfloat16) for w in weights]
    bs = [jnp.asarray(b, jnp.float32).reshape(1, -1) for b in biases]
    return ws, bs


# ---------------------------------------------------------------------------
# Tiling / VMEM budgeting (generation-aware: fits v7x's 64 MiB VMEM)
# ---------------------------------------------------------------------------
def _select_batch_tile(B, dims, batch_tile, vmem_budget):
    """Pick TB (multiple of 16) and an explicit vmem_limit_bytes with headroom."""
    # Grid-invariant params (bf16 weights + f32 biases), single-buffered; use
    # their physical VMEM footprint (sublane/lane padded) for the estimate.
    param_bytes = sum(
        _round_up(dims[i], BF16_SUBLANE) * _round_up(dims[i + 1], LANE) * 2
        + _round_up(dims[i + 1], LANE) * 4
        for i in range(len(dims) - 1))

    d_lane = _round_up(dims[0], LANE)
    c_lane = _round_up(dims[-1], LANE)
    h_lane = max(_round_up(d, LANE) for d in dims)

    def footprint(tb):
        x_tile = 2 * tb * d_lane * 2        # double-buffered bf16 input tile
        out_tile = 2 * tb * c_lane * 4      # double-buffered f32 output tile
        live_act = 2 * tb * h_lane * 4      # in-flight f32 activations (estimate)
        return param_bytes + x_tile + out_tile + live_act

    tb = _round_up(min(batch_tile, max(B, 1)), BF16_SUBLANE)
    # >= 2 grid steps so both v7x TensorCores get work (when the batch allows).
    if B >= 2 * BF16_SUBLANE:
        tb = min(tb, _round_up(-(-B // 2), BF16_SUBLANE))
    # Shrink until the per-step footprint fits the cross-generation budget.
    while tb > BF16_SUBLANE and footprint(tb) > vmem_budget:
        tb = max(BF16_SUBLANE, _round_up(tb // 2, BF16_SUBLANE))

    vmem_limit = int(min(56 * 1024 * 1024,
                         max(2 * footprint(tb), 16 * 1024 * 1024)))
    return tb, vmem_limit


def _param_block_spec(shape, single_buffer):
    """Grid-invariant block (index_map -> zeros); single-buffered if supported."""
    index_map = lambda i: (0,) * len(shape)
    if single_buffer and hasattr(pl, "Buffered"):
        try:
            return pl.BlockSpec(shape, index_map,
                                pipeline_mode=pl.Buffered(buffer_count=1))
        except TypeError:
            pass  # older jax: BlockSpec has no pipeline_mode kwarg
    return pl.BlockSpec(shape, index_map)


# ---------------------------------------------------------------------------
# Wrapper
# ---------------------------------------------------------------------------
def mlp_forward(x, weights_bf16, biases_f32, activation, *, batch_tile=1024,
                vmem_budget=32 * 1024 * 1024):
    """x: (B, 1, num_sample_pts). weights/biases from prepare_params().
    Returns (B, classes) f32, like the torch module."""
    num_hidden = len(weights_bf16) - 1  # last pair is the softmax_layer Linear
    B, one, D = x.shape
    assert one == 1, "module squeezes dim 1; it must be size 1"
    classes = weights_bf16[-1].shape[1]
    dims = [D] + [w.shape[1] for w in weights_bf16]

    # Stream x as bf16 (it is cast before the first MXU dot anyway); no lane
    # padding of the feature dim -> no HBM read amplification.
    x2 = x.reshape(B, D).astype(jnp.bfloat16)

    TB, vmem_limit = _select_batch_tile(B, dims, batch_tile, vmem_budget)
    B_pad = _round_up(B, TB)
    if B_pad != B:
        x2 = jnp.pad(x2, ((0, B_pad - B), (0, 0)))
    num_blocks = B_pad // TB

    flat_params = []
    for w, b in zip(weights_bf16, biases_f32):
        flat_params.extend([w, b])

    # ---- advisory cost estimate --------------------------------------------
    flops = 2 * B_pad * sum(dims[i] * dims[i + 1] for i in range(len(dims) - 1))
    transcendentals = (0 if activation == "relu"
                       else B_pad * dims[1] * num_hidden)
    bytes_accessed = (x2.size * x2.dtype.itemsize
                      + B_pad * classes * 4
                      + sum(int(p.size) * p.dtype.itemsize for p in flat_params))
    cost = pl.CostEstimate(flops=int(flops),
                           transcendentals=int(transcendentals),
                           bytes_accessed=int(bytes_accessed))

    kernel = functools.partial(
        _mlp_kernel, num_hidden=num_hidden, activation=activation)

    def _build(single_buffer):
        param_specs = []
        for w, b in zip(weights_bf16, biases_f32):
            param_specs.append(_param_block_spec(w.shape, single_buffer))
            param_specs.append(_param_block_spec(b.shape, single_buffer))
        in_specs = [pl.BlockSpec((TB, D), lambda i: (i, 0))] + param_specs
        # Unpadded (full-dim) last axis for the output -> no write amplification.
        out_specs = pl.BlockSpec((TB, classes), lambda i: (i, 0))
        return pl.pallas_call(
            kernel,
            out_shape=jax.ShapeDtypeStruct((B_pad, classes), jnp.float32),
            grid=(num_blocks,),
            in_specs=in_specs,
            out_specs=out_specs,
            compiler_params=pltpu.CompilerParams(
                dimension_semantics=("parallel",),
                vmem_limit_bytes=vmem_limit),
            cost_estimate=cost,
        )

    try:
        out_pad = _build(single_buffer=True)(x2, *flat_params)
    except Exception:
        # Fallback if this jax/libtpu build rejects Buffered(1): params are
        # merely double-buffered, everything else is identical.
        out_pad = _build(single_buffer=False)(x2, *flat_params)

    return out_pad[:B, :]


# ---------------------------------------------------------------------------
# Deterministic parameter construction (mimics nn.Linear default init)
# ---------------------------------------------------------------------------
def init_params(key, num_layers, num_sample_pts, neurons, classes):
    dims = [num_sample_pts] + [neurons] * num_layers + [classes]
    weights, biases = [], []
    for i in range(len(dims) - 1):
        fan_in, fan_out = dims[i], dims[i + 1]
        key, kw, kb = jax.random.split(key, 3)
        bound = 1.0 / jnp.sqrt(fan_in)
        # Stored as (in, out) so the kernel does h @ W + b.
        w = jax.random.uniform(kw, (fan_in, fan_out), jnp.float32, -bound, bound)
        b = jax.random.uniform(kb, (fan_out,), jnp.float32, -bound, bound)
        weights.append(w)
        biases.append(b)
    return weights, biases


def reference_forward(x, weights, biases, activation):
    B, _, D = x.shape
    h = x.reshape(B, D)
    for i, (w, b) in enumerate(zip(weights, biases)):
        h = h @ w + b
        if i < len(weights) - 1:
            h = _activation(h, activation)
    return h


if __name__ == "__main__":
    # search_space = {'layers': 3, 'neurons': 32, 'activation': 'relu'}
    layers, neurons, activation = 3, 32, "relu"
    num_sample_pts, classes, batch = 16, 8, 2

    key = jax.random.PRNGKey(0)
    key, kx = jax.random.split(key)
    x = jax.random.normal(kx, (batch, 1, num_sample_pts), jnp.float32)

    weights, biases = init_params(key, layers, num_sample_pts, neurons, classes)
    # One-time parameter prep (bf16 weights, f32 (1, out) biases).
    w_bf16, b_f32 = prepare_params(weights, biases)

    out = mlp_forward(x, w_bf16, b_f32, activation)
    out = jax.block_until_ready(out)

    ref = reference_forward(x, weights, biases, activation)
    assert out.shape == (batch, classes)
    # Kernel uses bf16 MXU inputs with f32 accumulation; compare against the
    # pure-f32 reference with a tolerance that covers bf16 rounding.
    assert jnp.allclose(out, ref, atol=2e-2, rtol=2e-2), (
        f"max abs err {float(jnp.max(jnp.abs(out - ref)))}")
    print("KERNEL_OK")
</pallas_src>

<mosaic_0001>
module attributes {stable_mosaic.version = 11 : i64} {
  func.func @_mlp_kernel(%arg0: i32, %arg1: memref<16x16xbf16, #tpu.memory_space<vmem>>, %arg2: memref<16x32xbf16, #tpu.memory_space<vmem>>, %arg3: memref<1x32xf32, #tpu.memory_space<vmem>>, %arg4: memref<32x32xbf16, #tpu.memory_space<vmem>>, %arg5: memref<1x32xf32, #tpu.memory_space<vmem>>, %arg6: memref<32x32xbf16, #tpu.memory_space<vmem>>, %arg7: memref<1x32xf32, #tpu.memory_space<vmem>>, %arg8: memref<32x8xbf16, #tpu.memory_space<vmem>>, %arg9: memref<1x8xf32, #tpu.memory_space<vmem>>, %arg10: memref<16x8xf32, #tpu.memory_space<vmem>>) attributes {dimension_semantics = [#tpu.dimension_semantics<parallel>], iteration_bounds = array<i64: 1>, scalar_prefetch = 0 : i64, scratch_operands = 0 : i64, tpu.core_type = #tpu.core_type<tc>, window_params = [{transform_indices = @transform_0, window_bounds = array<i64: 16, 16>}, {pipeline_mode = #tpu.pipeline_mode<synchronous>, transform_indices = @transform_1, window_bounds = array<i64: 16, 32>}, {pipeline_mode = #tpu.pipeline_mode<synchronous>, transform_indices = @transform_2, window_bounds = array<i64: 1, 32>}, {pipeline_mode = #tpu.pipeline_mode<synchronous>, transform_indices = @transform_3, window_bounds = array<i64: 32, 32>}, {pipeline_mode = #tpu.pipeline_mode<synchronous>, transform_indices = @transform_4, window_bounds = array<i64: 1, 32>}, {pipeline_mode = #tpu.pipeline_mode<synchronous>, transform_indices = @transform_5, window_bounds = array<i64: 32, 32>}, {pipeline_mode = #tpu.pipeline_mode<synchronous>, transform_indices = @transform_6, window_bounds = array<i64: 1, 32>}, {pipeline_mode = #tpu.pipeline_mode<synchronous>, transform_indices = @transform_7, window_bounds = array<i64: 32, 8>}, {pipeline_mode = #tpu.pipeline_mode<synchronous>, transform_indices = @transform_8, window_bounds = array<i64: 1, 8>}, {transform_indices = @transform_9, window_bounds = array<i64: 16, 8>}]} {
    %c0 = arith.constant 0 : index
    %c0_0 = arith.constant 0 : index
    %0 = vector.load %arg1[%c0, %c0_0] : memref<16x16xbf16, #tpu.memory_space<vmem>>, vector<16x16xbf16>
    %c0_1 = arith.constant 0 : index
    %c0_2 = arith.constant 0 : index
    %1 = vector.load %arg2[%c0_1, %c0_2] : memref<16x32xbf16, #tpu.memory_space<vmem>>, vector<16x32xbf16>
    %c0_3 = arith.constant 0 : index
    %c0_4 = arith.constant 0 : index
    %2 = vector.load %arg3[%c0_3, %c0_4] : memref<1x32xf32, #tpu.memory_space<vmem>>, vector<1x32xf32>
    %cst = arith.constant dense<0.000000e+00> : vector<16x32xf32>
    %3 = tpu.matmul %0, %1, %cst {dimension_numbers = #tpu.dot_dimension_numbers<[1], [0], [0], [1], [0, 0, 1, 1], [], []>} : vector<16x16xbf16>, vector<16x32xbf16>, vector<16x32xf32> -> vector<16x32xf32>
    %4 = vector.broadcast %2 : vector<1x32xf32> to vector<16x32xf32>
    %5 = arith.addf %3, %4 : vector<16x32xf32>
    %cst_5 = arith.constant 0.000000e+00 : f32
    %6 = vector.broadcast %cst_5 : f32 to vector<16x32xf32>
    %7 = arith.maximumf %5, %6 : vector<16x32xf32>
    %c0_6 = arith.constant 0 : index
    %c0_7 = arith.constant 0 : index
    %8 = vector.load %arg4[%c0_6, %c0_7] : memref<32x32xbf16, #tpu.memory_space<vmem>>, vector<32x32xbf16>
    %c0_8 = arith.constant 0 : index
    %c0_9 = arith.constant 0 : index
    %9 = vector.load %arg5[%c0_8, %c0_9] : memref<1x32xf32, #tpu.memory_space<vmem>>, vector<1x32xf32>
    %10 = arith.truncf %7 : vector<16x32xf32> to vector<16x32xbf16>
    %cst_10 = arith.constant dense<0.000000e+00> : vector<16x32xf32>
    %11 = tpu.matmul %10, %8, %cst_10 {dimension_numbers = #tpu.dot_dimension_numbers<[1], [0], [0], [1], [0, 0, 1, 1], [], []>} : vector<16x32xbf16>, vector<32x32xbf16>, vector<16x32xf32> -> vector<16x32xf32>
    %12 = vector.broadcast %9 : vector<1x32xf32> to vector<16x32xf32>
    %13 = arith.addf %11, %12 : vector<16x32xf32>
    %cst_11 = arith.constant 0.000000e+00 : f32
    %14 = vector.broadcast %cst_11 : f32 to vector<16x32xf32>
    %15 = arith.maximumf %13, %14 : vector<16x32xf32>
    %c0_12 = arith.constant 0 : index
    %c0_13 = arith.constant 0 : index
    %16 = vector.load %arg6[%c0_12, %c0_13] : memref<32x32xbf16, #tpu.memory_space<vmem>>, vector<32x32xbf16>
    %c0_14 = arith.constant 0 : index
    %c0_15 = arith.constant 0 : index
    %17 = vector.load %arg7[%c0_14, %c0_15] : memref<1x32xf32, #tpu.memory_space<vmem>>, vector<1x32xf32>
    %18 = arith.truncf %15 : vector<16x32xf32> to vector<16x32xbf16>
    %cst_16 = arith.constant dense<0.000000e+00> : vector<16x32xf32>
    %19 = tpu.matmul %18, %16, %cst_16 {dimension_numbers = #tpu.dot_dimension_numbers<[1], [0], [0], [1], [0, 0, 1, 1], [], []>} : vector<16x32xbf16>, vector<32x32xbf16>, vector<16x32xf32> -> vector<16x32xf32>
    %20 = vector.broadcast %17 : vector<1x32xf32> to vector<16x32xf32>
    %21 = arith.addf %19, %20 : vector<16x32xf32>
    %cst_17 = arith.constant 0.000000e+00 : f32
    %22 = vector.broadcast %cst_17 : f32 to vector<16x32xf32>
    %23 = arith.maximumf %21, %22 : vector<16x32xf32>
    %c0_18 = arith.constant 0 : index
    %c0_19 = arith.constant 0 : index
    %24 = vector.load %arg8[%c0_18, %c0_19] : memref<32x8xbf16, #tpu.memory_space<vmem>>, vector<32x8xbf16>
    %c0_20 = arith.constant 0 : index
    %c0_21 = arith.constant 0 : index
    %25 = vector.load %arg9[%c0_20, %c0_21] : memref<1x8xf32, #tpu.memory_space<vmem>>, vector<1x8xf32>
    %26 = arith.truncf %23 : vector<16x32xf32> to vector<16x32xbf16>
    %cst_22 = arith.constant dense<0.000000e+00> : vector<16x8xf32>
    %27 = tpu.matmul %26, %24, %cst_22 {dimension_numbers = #tpu.dot_dimension_numbers<[1], [0], [0], [1], [0, 0, 1, 1], [], []>} : vector<16x32xbf16>, vector<32x8xbf16>, vector<16x8xf32> -> vector<16x8xf32>
    %28 = vector.broadcast %25 : vector<1x8xf32> to vector<16x8xf32>
    %29 = arith.addf %27, %28 : vector<16x8xf32>
    %c0_23 = arith.constant 0 : index
    %c0_24 = arith.constant 0 : index
    %30 = vector.load %arg10[%c0_23, %c0_24] : memref<16x8xf32, #tpu.memory_space<vmem>>, vector<16x8xf32>
    tpu.vector_store %arg10[%c0_23, %c0_24], %29 {strides = array<i32>} : memref<16x8xf32, #tpu.memory_space<vmem>>, vector<16x8xf32>,
    return
  }
  func.func @transform_0(%arg0: i32) -> (i32, i32) {
    %c0_i32 = arith.constant 0 : i32
    %c0_i32_0 = arith.constant 0 : i32
    return %arg0, %c0_i32 : i32, i32
  }
  func.func @transform_1(%arg0: i32) -> (i32, i32) {
    %c0_i32 = arith.constant 0 : i32
    %c0_i32_0 = arith.constant 0 : i32
    %c0_i32_1 = arith.constant 0 : i32
    return %c0_i32, %c0_i32_0 : i32, i32
  }
  func.func @transform_2(%arg0: i32) -> (i32, i32) {
    %c0_i32 = arith.constant 0 : i32
    %c0_i32_0 = arith.constant 0 : i32
    %c0_i32_1 = arith.constant 0 : i32
    return %c0_i32, %c0_i32_0 : i32, i32
  }
  func.func @transform_3(%arg0: i32) -> (i32, i32) {
    %c0_i32 = arith.constant 0 : i32
    %c0_i32_0 = arith.constant 0 : i32
    %c0_i32_1 = arith.constant 0 : i32
    return %c0_i32, %c0_i32_0 : i32, i32
  }
  func.func @transform_4(%arg0: i32) -> (i32, i32) {
    %c0_i32 = arith.constant 0 : i32
    %c0_i32_0 = arith.constant 0 : i32
    %c0_i32_1 = arith.constant 0 : i32
    return %c0_i32, %c0_i32_0 : i32, i32
  }
  func.func @transform_5(%arg0: i32) -> (i32, i32) {
    %c0_i32 = arith.constant 0 : i32
    %c0_i32_0 = arith.constant 0 : i32
    %c0_i32_1 = arith.constant 0 : i32
    return %c0_i32, %c0_i32_0 : i32, i32
  }
  func.func @transform_6(%arg0: i32) -> (i32, i32) {
    %c0_i32 = arith.constant 0 : i32
    %c0_i32_0 = arith.constant 0 : i32
    %c0_i32_1 = arith.constant 0 : i32
    return %c0_i32, %c0_i32_0 : i32, i32
  }
  func.func @transform_7(%arg0: i32) -> (i32, i32) {
    %c0_i32 = arith.constant 0 : i32
    %c0_i32_0 = arith.constant 0 : i32
    %c0_i32_1 = arith.constant 0 : i32
    return %c0_i32, %c0_i32_0 : i32, i32
  }
  func.func @transform_8(%arg0: i32) -> (i32, i32) {
    %c0_i32 = arith.constant 0 : i32
    %c0_i32_0 = arith.constant 0 : i32
    %c0_i32_1 = arith.constant 0 : i32
    return %c0_i32, %c0_i32_0 : i32, i32
  }
  func.func @transform_9(%arg0: i32) -> (i32, i32) {
    %c0_i32 = arith.constant 0 : i32
    %c0_i32_0 = arith.constant 0 : i32
    return %arg0, %c0_i32 : i32, i32
  }
}

module attributes {stable_mosaic.version = 11 : i64} {
  func.func @_mlp_kernel(%arg0: i32, %arg1: memref<16x16xbf16, #tpu.memory_space<vmem>>, %arg2: memref<16x32xbf16, #tpu.memory_space<vmem>>, %arg3: memref<1x32xf32, #tpu.memory_space<vmem>>, %arg4: memref<32x32xbf16, #tpu.memory_space<vmem>>, %arg5: memref<1x32xf32, #tpu.memory_space<vmem>>, %arg6: memref<32x32xbf16, #tpu.memory_space<vmem>>, %arg7: memref<1x32xf32, #tpu.memory_space<vmem>>, %arg8: memref<32x8xbf16, #tpu.memory_space<vmem>>, %arg9: memref<1x8xf32, #tpu.memory_space<vmem>>, %arg10: memref<16x8xf32, #tpu.memory_space<vmem>>) attributes {dimension_semantics = [#tpu.dimension_semantics<parallel>], iteration_bounds = array<i64: 1>, scalar_prefetch = 0 : i64, scratch_operands = 0 : i64, tpu.core_type = #tpu.core_type<tc>, window_params = [{transform_indices = @transform_0, window_bounds = array<i64: 16, 16>}, {pipeline_mode = #tpu.pipeline_mode<synchronous>, transform_indices = @transform_1, window_bounds = array<i64: 16, 32>}, {pipeline_mode = #tpu.pipeline_mode<synchronous>, transform_indices = @transform_2, window_bounds = array<i64: 1, 32>}, {pipeline_mode = #tpu.pipeline_mode<synchronous>, transform_indices = @transform_3, window_bounds = array<i64: 32, 32>}, {pipeline_mode = #tpu.pipeline_mode<synchronous>, transform_indices = @transform_4, window_bounds = array<i64: 1, 32>}, {pipeline_mode = #tpu.pipeline_mode<synchronous>, transform_indices = @transform_5, window_bounds = array<i64: 32, 32>}, {pipeline_mode = #tpu.pipeline_mode<synchronous>, transform_indices = @transform_6, window_bounds = array<i64: 1, 32>}, {pipeline_mode = #tpu.pipeline_mode<synchronous>, transform_indices = @transform_7, window_bounds = array<i64: 32, 8>}, {pipeline_mode = #tpu.pipeline_mode<synchronous>, transform_indices = @transform_8, window_bounds = array<i64: 1, 8>}, {transform_indices = @transform_9, window_bounds = array<i64: 16, 8>}]} {
    %c0 = arith.constant 0 : index
    %c0_0 = arith.constant 0 : index
    %0 = vector.load %arg1[%c0, %c0_0] : memref<16x16xbf16, #tpu.memory_space<vmem>>, vector<16x16xbf16>
    %c0_1 = arith.constant 0 : index
    %c0_2 = arith.constant 0 : index
    %1 = vector.load %arg2[%c0_1, %c0_2] : memref<16x32xbf16, #tpu.memory_space<vmem>>, vector<16x32xbf16>
    %c0_3 = arith.constant 0 : index
    %c0_4 = arith.constant 0 : index
    %2 = vector.load %arg3[%c0_3, %c0_4] : memref<1x32xf32, #tpu.memory_space<vmem>>, vector<1x32xf32>
    %cst = arith.constant dense<0.000000e+00> : vector<16x32xf32>
    %3 = tpu.matmul %0, %1, %cst {dimension_numbers = #tpu.dot_dimension_numbers<[1], [0], [0], [1], [0, 0, 1, 1], [], []>} : vector<16x16xbf16>, vector<16x32xbf16>, vector<16x32xf32> -> vector<16x32xf32>
    %4 = vector.broadcast %2 : vector<1x32xf32> to vector<16x32xf32>
    %5 = arith.addf %3, %4 : vector<16x32xf32>
    %cst_5 = arith.constant 0.000000e+00 : f32
    %6 = vector.broadcast %cst_5 : f32 to vector<16x32xf32>
    %7 = arith.maximumf %5, %6 : vector<16x32xf32>
    %c0_6 = arith.constant 0 : index
    %c0_7 = arith.constant 0 : index
    %8 = vector.load %arg4[%c0_6, %c0_7] : memref<32x32xbf16, #tpu.memory_space<vmem>>, vector<32x32xbf16>
    %c0_8 = arith.constant 0 : index
    %c0_9 = arith.constant 0 : index
    %9 = vector.load %arg5[%c0_8, %c0_9] : memref<1x32xf32, #tpu.memory_space<vmem>>, vector<1x32xf32>
    %10 = arith.truncf %7 : vector<16x32xf32> to vector<16x32xbf16>
    %cst_10 = arith.constant dense<0.000000e+00> : vector<16x32xf32>
    %11 = tpu.matmul %10, %8, %cst_10 {dimension_numbers = #tpu.dot_dimension_numbers<[1], [0], [0], [1], [0, 0, 1, 1], [], []>} : vector<16x32xbf16>, vector<32x32xbf16>, vector<16x32xf32> -> vector<16x32xf32>
    %12 = vector.broadcast %9 : vector<1x32xf32> to vector<16x32xf32>
    %13 = arith.addf %11, %12 : vector<16x32xf32>
    %cst_11 = arith.constant 0.000000e+00 : f32
    %14 = vector.broadcast %cst_11 : f32 to vector<16x32xf32>
    %15 = arith.maximumf %13, %14 : vector<16x32xf32>
    %c0_12 = arith.constant 0 : index
    %c0_13 = arith.constant 0 : index
    %16 = vector.load %arg6[%c0_12, %c0_13] : memref<32x32xbf16, #tpu.memory_space<vmem>>, vector<32x32xbf16>
    %c0_14 = arith.constant 0 : index
    %c0_15 = arith.constant 0 : index
    %17 = vector.load %arg7[%c0_14, %c0_15] : memref<1x32xf32, #tpu.memory_space<vmem>>, vector<1x32xf32>
    %18 = arith.truncf %15 : vector<16x32xf32> to vector<16x32xbf16>
    %cst_16 = arith.constant dense<0.000000e+00> : vector<16x32xf32>
    %19 = tpu.matmul %18, %16, %cst_16 {dimension_numbers = #tpu.dot_dimension_numbers<[1], [0], [0], [1], [0, 0, 1, 1], [], []>} : vector<16x32xbf16>, vector<32x32xbf16>, vector<16x32xf32> -> vector<16x32xf32>
    %20 = vector.broadcast %17 : vector<1x32xf32> to vector<16x32xf32>
    %21 = arith.addf %19, %20 : vector<16x32xf32>
    %cst_17 = arith.constant 0.000000e+00 : f32
    %22 = vector.broadcast %cst_17 : f32 to vector<16x32xf32>
    %23 = arith.maximumf %21, %22 : vector<16x32xf32>
    %c0_18 = arith.constant 0 : index
    %c0_19 = arith.constant 0 : index
    %24 = vector.load %arg8[%c0_18, %c0_19] : memref<32x8xbf16, #tpu.memory_space<vmem>>, vector<32x8xbf16>
    %c0_20 = arith.constant 0 : index
    %c0_21 = arith.constant 0 : index
    %25 = vector.load %arg9[%c0_20, %c0_21] : memref<1x8xf32, #tpu.memory_space<vmem>>, vector<1x8xf32>
    %26 = arith.truncf %23 : vector<16x32xf32> to vector<16x32xbf16>
    %cst_22 = arith.constant dense<0.000000e+00> : vector<16x8xf32>
    %27 = tpu.matmul %26, %24, %cst_22 {dimension_numbers = #tpu.dot_dimension_numbers<[1], [0], [0], [1], [0, 0, 1, 1], [], []>} : vector<16x32xbf16>, vector<32x8xbf16>, vector<16x8xf32> -> vector<16x8xf32>
    %28 = vector.broadcast %25 : vector<1x8xf32> to vector<16x8xf32>
    %29 = arith.addf %27, %28 : vector<16x8xf32>
    %c0_23 = arith.constant 0 : index
    %c0_24 = arith.constant 0 : index
    %30 = vector.load %arg10[%c0_23, %c0_24] : memref<16x8xf32, #tpu.memory_space<vmem>>, vector<16x8xf32>
    tpu.vector_store %arg10[%c0_23, %c0_24], %29 {strides = array<i32>} : memref<16x8xf32, #tpu.memory_space<vmem>>, vector<16x8xf32>,
    return
  }
  func.func @transform_0(%arg0: i32) -> (i32, i32) {
    %c0_i32 = arith.constant 0 : i32
    %c0_i32_0 = arith.constant 0 : i32
    return %arg0, %c0_i32 : i32, i32
  }
  func.func @transform_1(%arg0: i32) -> (i32, i32) {
    %c0_i32 = arith.constant 0 : i32
    %c0_i32_0 = arith.constant 0 : i32
    %c0_i32_1 = arith.constant 0 : i32
    return %c0_i32, %c0_i32_0 : i32, i32
  }
  func.func @transform_2(%arg0: i32) -> (i32, i32) {
    %c0_i32 = arith.constant 0 : i32
    %c0_i32_0 = arith.constant 0 : i32
    %c0_i32_1 = arith.constant 0 : i32
    return %c0_i32, %c0_i32_0 : i32, i32
  }
  func.func @transform_3(%arg0: i32) -> (i32, i32) {
    %c0_i32 = arith.constant 0 : i32
    %c0_i32_0 = arith.constant 0 : i32
    %c0_i32_1 = arith.constant 0 : i32
    return %c0_i32, %c0_i32_0 : i32, i32
  }
  func.func @transform_4(%arg0: i32) -> (i32, i32) {
    %c0_i32 = arith.constant 0 : i32
    %c0_i32_0 = arith.constant 0 : i32
    %c0_i32_1 = arith.constant 0 : i32
    return %c0_i32, %c0_i32_0 : i32, i32
  }
  func.func @transform_5(%arg0: i32) -> (i32, i32) {
    %c0_i32 = arith.constant 0 : i32
    %c0_i32_0 = arith.constant 0 : i32
    %c0_i32_1 = arith.constant 0 : i32
    return %c0_i32, %c0_i32_0 : i32, i32
  }
  func.func @transform_6(%arg0: i32) -> (i32, i32) {
    %c0_i32 = arith.constant 0 : i32
    %c0_i32_0 = arith.constant 0 : i32
    %c0_i32_1 = arith.constant 0 : i32
    return %c0_i32, %c0_i32_0 : i32, i32
  }
  func.func @transform_7(%arg0: i32) -> (i32, i32) {
    %c0_i32 = arith.constant 0 : i32
    %c0_i32_0 = arith.constant 0 : i32
    %c0_i32_1 = arith.constant 0 : i32
    return %c0_i32, %c0_i32_0 : i32, i32
  }
  func.func @transform_8(%arg0: i32) -> (i32, i32) {
    %c0_i32 = arith.constant 0 : i32
    %c0_i32_0 = arith.constant 0 : i32
    %c0_i32_1 = arith.constant 0 : i32
    return %c0_i32, %c0_i32_0 : i32, i32
  }
  func.func @transform_9(%arg0: i32) -> (i32, i32) {
    %c0_i32 = arith.constant 0 : i32
    %c0_i32_0 = arith.constant 0 : i32
    return %arg0, %c0_i32 : i32, i32
  }
}

</mosaic_0001>

<llo_original>
// kernel: tpu_custom_call.1
$region0: #{tpu_custom_call.1}
  #allocation0 [shape = 'u32[]', space=smem, size = 0x4, offset = 0x4, fixed_abs, tag = 'smem constant byte address 0x4 - core index']
  #allocation1 [shape = 'u32[72,128]{1,0:T(1,128)}', space=vmem, size = 0x9000, scoped, tag = 'internal scratch']
  %s0 = inlined_call_operand.hbm [shape: bf16[16,16], index: 0, kind: input, shape index: {}]
  %s1 = inlined_call_operand.hbm [shape: bf16[16,32], index: 1, kind: input, shape index: {}]
  %s2 = inlined_call_operand.vmem [shape: f32[1,32], index: 2, kind: input, shape index: {}]
  %s3 = inlined_call_operand.vmem [shape: bf16[32,32], index: 3, kind: input, shape index: {}]
  %s4 = inlined_call_operand.vmem [shape: f32[1,32], index: 4, kind: input, shape index: {}]
  %s5 = inlined_call_operand.hbm [shape: bf16[32,32], index: 5, kind: input, shape index: {}]
  %s6 = inlined_call_operand.vmem [shape: f32[1,32], index: 6, kind: input, shape index: {}]
  %s7 = inlined_call_operand.vmem [shape: bf16[32,8], index: 7, kind: input, shape index: {}]
  %s8 = inlined_call_operand.vmem [shape: f32[1,8], index: 8, kind: input, shape index: {}]
  %s9 = inlined_call_operand.vmem [shape: f32[16,8], index: 9, kind: output, shape index: {}]
  %s10 = sld [smem:[#allocation0]]
  $region58: #{tpu_custom_call.1} parent=0
    _
  %s12 = ssub.s32 1, %s10
  %s13 = scalar_select 0, %s12, %s10
  $region1: #{tpu_custom_call.1} parent=0
    #allocation2 [shape = 'u8[4096]{0}', space=vmem, size = 0x1000, scoped, tag = 'input window, operand 0, single buffered']
    #allocation3 [shape = 's32[1]{0}', space=sflag, size = 0x4, scoped, tag = 'scoped memory for tpu_custom_call.1']
    #allocation4 [shape = 'u8[4096]{0}', space=vmem, size = 0x1000, scoped, tag = 'input window, operand 1, single buffered']
    #allocation5 [shape = 's32[1]{0}', space=sflag, size = 0x4, scoped, tag = 'scoped memory for tpu_custom_call.1']
    #allocation6 [shape = 'u8[8192]{0}', space=vmem, size = 0x2000, scoped, tag = 'input window, operand 5, single buffered']
    %14 = vsyncpa [#allocation3], 0
    %15 = vsyncpa [#allocation5], 0
    // Predicated region
    $region2: #{tpu_custom_call.1} parent=1 // pred_check
      _
    $region3: #{tpu_custom_call.1} parent=1 // pred_check_branch
      %17 = sbr.rel (0) target = $region5
    $region4: #{tpu_custom_call.1} parent=1 // pred_region
      %19 = vsyncadd [#allocation3], 0
      %s20 = sshll.u32 %s0, 4
      %s21 = int_to_ptr.hbm [resolvable:$true] %s20
      %s22 = sshll.u32 [#allocation2], 4
      %s23 = int_to_ptr.vmem [resolvable:$true] %s22
      %28 = dma.hbm_to_vmem [thread:$0]  %s21, 128, %s23, [#allocation3], 64, 64, 4
    $region5: #{tpu_custom_call.1} parent=1 // pred_fallthru
      _
    // Predicated region
    $region6: #{tpu_custom_call.1} parent=1 // pred_check
      _
    $region7: #{tpu_custom_call.1} parent=1 // pred_check_branch
      %30 = sbr.rel (0) target = $region9
    $region8: #{tpu_custom_call.1} parent=1 // pred_region
      %32 = vsyncadd [#allocation5], 0
      %s33 = sshll.u32 %s1, 4
      %s34 = int_to_ptr.hbm [resolvable:$true] %s33
      %s35 = sshll.u32 [#allocation4], 4
      %s36 = int_to_ptr.vmem [resolvable:$true] %s35
      %41 = dma.hbm_to_vmem [thread:$0]  %s34, 128, %s36, [#allocation5], 64, 64, 4
    $region9: #{tpu_custom_call.1} parent=1 // pred_fallthru
      _
    // Predicated region
    $region10: #{tpu_custom_call.1} parent=1 // pred_check
      _
    $region11: #{tpu_custom_call.1} parent=1 // pred_check_branch
      %43 = sbr.rel (0) target = $region13
    $region12: #{tpu_custom_call.1} parent=1 // pred_region
      _
    $region13: #{tpu_custom_call.1} parent=1 // pred_fallthru
      _
    // Predicated region
    $region14: #{tpu_custom_call.1} parent=1 // pred_check
      _
    $region15: #{tpu_custom_call.1} parent=1 // pred_check_branch
      %45 = sbr.rel (0) target = $region17
    $region16: #{tpu_custom_call.1} parent=1 // pred_region
      _
    $region17: #{tpu_custom_call.1} parent=1 // pred_fallthru
      _
    // Predicated region
    $region18: #{tpu_custom_call.1} parent=1 // pred_check
      _
    $region19: #{tpu_custom_call.1} parent=1 // pred_check_branch
      %47 = sbr.rel (0) target = $region21
    $region20: #{tpu_custom_call.1} parent=1 // pred_region
      _
    $region21: #{tpu_custom_call.1} parent=1 // pred_fallthru
      _
    // Predicated region
    $region22: #{tpu_custom_call.1} parent=1 // pred_check
      _
    $region23: #{tpu_custom_call.1} parent=1 // pred_check_branch
      %49 = sbr.rel (0) target = $region25
    $region24: #{tpu_custom_call.1} parent=1 // pred_region
      %51 = vsyncadd [#allocation5], 0
      %s52 = sshll.u32 %s5, 4
      %s53 = int_to_ptr.hbm [resolvable:$true] %s52
      %s54 = sshll.u32 [#allocation6], 4
      %s55 = int_to_ptr.vmem [resolvable:$true] %s54
      %60 = dma.hbm_to_vmem [thread:$0]  %s53, 256, %s55, [#allocation5], 64, 64, 4
    $region25: #{tpu_custom_call.1} parent=1 // pred_fallthru
      _
    // Predicated region
    $region26: #{tpu_custom_call.1} parent=1 // pred_check
      _
    $region27: #{tpu_custom_call.1} parent=1 // pred_check_branch
      %62 = sbr.rel (0) target = $region29
    $region28: #{tpu_custom_call.1} parent=1 // pred_region
      _
    $region29: #{tpu_custom_call.1} parent=1 // pred_fallthru
      _
    // Predicated region
    $region30: #{tpu_custom_call.1} parent=1 // pred_check
      _
    $region31: #{tpu_custom_call.1} parent=1 // pred_check_branch
      %64 = sbr.rel (0) target = $region33
    $region32: #{tpu_custom_call.1} parent=1 // pred_region
      _
    $region33: #{tpu_custom_call.1} parent=1 // pred_fallthru
      _
    // Predicated region
    $region34: #{tpu_custom_call.1} parent=1 // pred_check
      _
    $region35: #{tpu_custom_call.1} parent=1 // pred_check_branch
      %66 = sbr.rel (0) target = $region37
    $region36: #{tpu_custom_call.1} parent=1 // pred_region
      _
    $region37: #{tpu_custom_call.1} parent=1 // pred_fallthru
      _
    // Predicated region
    $region38: #{tpu_custom_call.1} parent=1 // pred_check
      _
    $region39: #{tpu_custom_call.1} parent=1 // pred_check_branch
      %68 = sbr.rel (0) target = $region41
    $region40: #{tpu_custom_call.1} parent=1 // pred_region
      %70 = dma.done [#allocation3], 128
    $region41: #{tpu_custom_call.1} parent=1 // pred_fallthru
      _
    // Predicated region
    $region42: #{tpu_custom_call.1} parent=1 // pred_check
      _
    $region43: #{tpu_custom_call.1} parent=1 // pred_check_branch
      %72 = sbr.rel (0) target = $region45
    $region44: #{tpu_custom_call.1} parent=1 // pred_region
      %74 = dma.done [#allocation5], 128
    $region45: #{tpu_custom_call.1} parent=1 // pred_fallthru
      _
    // Predicated region
    $region46: #{tpu_custom_call.1} parent=1 // pred_check
      _
    $region47: #{tpu_custom_call.1} parent=1 // pred_check_branch
      %76 = sbr.rel (0) target = $region49
    $region48: #{tpu_custom_call.1} parent=1 // pred_region
      %78 = dma.done [#allocation5], 256
    $region49: #{tpu_custom_call.1} parent=1 // pred_fallthru
      _
    %v80 = vld [vmem:[#allocation2] sm:$0xf]
    %v81 = vld [vmem:[#allocation2 + $0x4] sm:$0xf]
    %v82 = vld [vmem:[#allocation4] sm:$0xf]
    %v83 = vld [vmem:[#allocation4 + $0x4] sm:$0xf]
    %v84 = vld [vmem:[%s2] sm:$0x1]
    %v86 = vperm.slane %v84, 0
    %v90 = vunpack.c.l.b16 %v80
    %v91 = vunpack.c.l.b16 %v81
    %v92 = vpack.c.b16 %v91, %v90
    %v95 = vunpack.c.l.b16 %v82
    %v96 = vunpack.c.l.b16 %v83
    %v97 = vpack.c.b16 %v96, %v95
    %vm99 = vcmask 130048
    %v101 = vsel %vm99, %v92, 0
    %103 = vmatpush.bf16.msra.mxu0 0
    %104 = vmatpush.bf16.msra.mxu0 0
    %105 = vmatpush.bf16.msra.mxu0 0
    %106 = vmatpush.bf16.msra.mxu0 0
    %107 = vmatpush.bf16.msra.mxu0 0
    %108 = vmatpush.bf16.msra.mxu0 0
    %109 = vmatpush.bf16.msra.mxu0 0
    %110 = vmatpush.bf16.msra.mxu0 %v97
    %111 = vmatmul.bf16.gmra.mxu0 %v101
    %v112 = vpop.f32.mrf.mxu0
    %v113 = vadd.f32 %v86, %v112
    %v114 = vpop.f32.mrf.mxu0
    %v115 = vadd.f32 %v86, %v114
    %116 = vdwg.mxu0
    %v117 = vmax.f32 %v113, 0.0
    %v118 = vmax.f32 %v115, 0.0
    %v119 = vld [vmem:[%s3] sm:$0xf]
    %v120 = vld [vmem:[%s3 + $0x4] sm:$0xf]
    %v121 = vld [vmem:[%s3 + $0x8] sm:$0xf]
    %v122 = vld [vmem:[%s3 + $0xc] sm:$0xf]
    %v123 = vld [vmem:[%s4] sm:$0x1]
    %v124 = vpack.c.bf16 %v118, %v117
    %v126 = vperm.slane %v123, 0
    %v132 = vunpack.c.l.b16 %v119
    %v133 = vunpack.c.l.b16 %v120
    %v134 = vunpack.c.l.b16 %v121
    %v135 = vunpack.c.l.b16 %v122
    %v136 = vpack.c.b16 %v133, %v132
    %v137 = vpack.c.b16 %v135, %v134
    %vm140 = vcmask 261120
    %v142 = vsel %vm140, %v124, 0
    %144 = vmatpush.bf16.msra.mxu0 0
    %145 = vmatpush.bf16.msra.mxu0 0
    %146 = vmatpush.bf16.msra.mxu0 0
    %147 = vmatpush.bf16.msra.mxu0 0
    %148 = vmatpush.bf16.msra.mxu0 0
    %149 = vmatpush.bf16.msra.mxu0 0
    %150 = vmatpush.bf16.msra.mxu0 %v137
    %151 = vmatpush.bf16.msra.mxu0 %v136
    %152 = vmatmul.bf16.gmra.mxu0 %v142
    %v153 = vpop.f32.mrf.mxu0
    %v154 = vadd.f32 %v126, %v153
    %v155 = vpop.f32.mrf.mxu0
    %v156 = vadd.f32 %v126, %v155
    %157 = vdwg.mxu0
    %v158 = vmax.f32 %v154, 0.0
    %v159 = vmax.f32 %v156, 0.0
    %v160 = vld [vmem:[#allocation6] sm:$0xf]
    %v161 = vld [vmem:[#allocation6 + $0x4] sm:$0xf]
    %v162 = vld [vmem:[#allocation6 + $0x8] sm:$0xf]
    %v163 = vld [vmem:[#allocation6 + $0xc] sm:$0xf]
    %v164 = vld [vmem:[%s6] sm:$0x1]
    %v165 = vpack.c.bf16 %v159, %v158
    %v167 = vperm.slane %v164, 0
    %v173 = vunpack.c.l.b16 %v160
    %v174 = vunpack.c.l.b16 %v161
    %v175 = vunpack.c.l.b16 %v162
    %v176 = vunpack.c.l.b16 %v163
    %v177 = vpack.c.b16 %v174, %v173
    %v178 = vpack.c.b16 %v176, %v175
    %v182 = vsel %vm140, %v165, 0
    %184 = vmatpush.bf16.msra.mxu0 0
    %185 = vmatpush.bf16.msra.mxu0 0
    %186 = vmatpush.bf16.msra.mxu0 0
    %187 = vmatpush.bf16.msra.mxu0 0
    %188 = vmatpush.bf16.msra.mxu0 0
    %189 = vmatpush.bf16.msra.mxu0 0
    %190 = vmatpush.bf16.msra.mxu0 %v178
    %191 = vmatpush.bf16.msra.mxu0 %v177
    %192 = vmatmul.bf16.gmra.mxu0 %v182
    %v193 = vpop.f32.mrf.mxu0
    %v194 = vadd.f32 %v167, %v193
    %v195 = vpop.f32.mrf.mxu0
    %v196 = vadd.f32 %v167, %v195
    %197 = vdwg.mxu0
    %v198 = vmax.f32 %v194, 0.0
    %v199 = vmax.f32 %v196, 0.0
    %v200 = vld [vmem:[%s7] sm:$0xf]
    %v201 = vld [vmem:[%s7 + $0x4] sm:$0xf]
    %v202 = vld [vmem:[%s7 + $0x8] sm:$0xf]
    %v203 = vld [vmem:[%s7 + $0xc] sm:$0xf]
    %v204 = vld [vmem:[%s8] sm:$0x1]
    %v205 = vpack.c.bf16 %v199, %v198
    %v207 = vperm.slane %v204, 0
    %v213 = vunpack.c.l.b16 %v200
    %v214 = vunpack.c.l.b16 %v201
    %v215 = vunpack.c.l.b16 %v202
    %v216 = vunpack.c.l.b16 %v203
    %v217 = vpack.c.b16 %v214, %v213
    %v218 = vpack.c.b16 %v216, %v215
    %v222 = vsel %vm140, %v205, 0
    %224 = vmatpush.bf16.msra.mxu0 0
    %225 = vmatpush.bf16.msra.mxu0 0
    %226 = vmatpush.bf16.msra.mxu0 0
    %227 = vmatpush.bf16.msra.mxu0 0
    %228 = vmatpush.bf16.msra.mxu0 0
    %229 = vmatpush.bf16.msra.mxu0 0
    %230 = vmatpush.bf16.msra.mxu0 %v218
    %231 = vmatpush.bf16.msra.mxu0 %v217
    %232 = vmatmul.bf16.gmra.mxu0 %v222
    %v233 = vpop.f32.mrf.mxu0
    %v234 = vadd.f32 %v207, %v233
    %v235 = vpop.f32.mrf.mxu0
    %v236 = vadd.f32 %v207, %v235
    %237 = vdwg.mxu0
    %vm238 = vcmask 64512
    %239 = vst.msk [vmem:[%s9] sm:$0xff] %vm238, %v234
    %240 = vst.msk [vmem:[%s9 + $0x8] sm:$0xff] %vm238, %v236
    // Predicated region
    $region50: #{tpu_custom_call.1} parent=1 // pred_check
      _
    $region51: #{tpu_custom_call.1} parent=1 // pred_check_branch
      %242 = sbr.rel (0) target = $region53
    $region52: #{tpu_custom_call.1} parent=1 // pred_region
      _
    $region53: #{tpu_custom_call.1} parent=1 // pred_fallthru
      _
    // Predicated region
    $region54: #{tpu_custom_call.1} parent=1 // pred_check
      _
    $region55: #{tpu_custom_call.1} parent=1 // pred_check_branch
      %244 = sbr.rel (0) target = $region57
    $region56: #{tpu_custom_call.1} parent=1 // pred_region
      _
    $region57: #{tpu_custom_call.1} parent=1 // pred_fallthru
      _
    %245 = vsyncpa [#allocation3], 1
    %246 = vsyncpa [#allocation5], 1

// kernel: tpu_custom_call.1
$region0: #{tpu_custom_call.1}
  #allocation0 [shape = 'u32[]', space=smem, size = 0x4, offset = 0x4, fixed_abs, tag = 'smem constant byte address 0x4 - core index']
  #allocation1 [shape = 'u32[72,128]{1,0:T(1,128)}', space=vmem, size = 0x9000, scoped, tag = 'internal scratch']
  %s0 = inlined_call_operand.hbm [shape: bf16[16,16], index: 0, kind: input, shape index: {}]
  %s1 = inlined_call_operand.hbm [shape: bf16[16,32], index: 1, kind: input, shape index: {}]
  %s2 = inlined_call_operand.vmem [shape: f32[1,32], index: 2, kind: input, shape index: {}]
  %s3 = inlined_call_operand.vmem [shape: bf16[32,32], index: 3, kind: input, shape index: {}]
  %s4 = inlined_call_operand.vmem [shape: f32[1,32], index: 4, kind: input, shape index: {}]
  %s5 = inlined_call_operand.hbm [shape: bf16[32,32], index: 5, kind: input, shape index: {}]
  %s6 = inlined_call_operand.vmem [shape: f32[1,32], index: 6, kind: input, shape index: {}]
  %s7 = inlined_call_operand.vmem [shape: bf16[32,8], index: 7, kind: input, shape index: {}]
  %s8 = inlined_call_operand.vmem [shape: f32[1,8], index: 8, kind: input, shape index: {}]
  %s9 = inlined_call_operand.vmem [shape: f32[16,8], index: 9, kind: output, shape index: {}]
  %s10 = sld [smem:[#allocation0]]
  $region58: #{tpu_custom_call.1} parent=0
    _
  %s12 = ssub.s32 1, %s10
  %s13 = scalar_select 0, %s12, %s10
  $region1: #{tpu_custom_call.1} parent=0
    #allocation2 [shape = 'u8[4096]{0}', space=vmem, size = 0x1000, scoped, tag = 'input window, operand 0, single buffered']
    #allocation3 [shape = 's32[1]{0}', space=sflag, size = 0x4, scoped, tag = 'scoped memory for tpu_custom_call.1']
    #allocation4 [shape = 'u8[4096]{0}', space=vmem, size = 0x1000, scoped, tag = 'input window, operand 1, single buffered']
    #allocation5 [shape = 's32[1]{0}', space=sflag, size = 0x4, scoped, tag = 'scoped memory for tpu_custom_call.1']
    #allocation6 [shape = 'u8[8192]{0}', space=vmem, size = 0x2000, scoped, tag = 'input window, operand 5, single buffered']
    %14 = vsyncpa [#allocation3], 0
    %15 = vsyncpa [#allocation5], 0
    // Predicated region
    $region2: #{tpu_custom_call.1} parent=1 // pred_check
      _
    $region3: #{tpu_custom_call.1} parent=1 // pred_check_branch
      %17 = sbr.rel (0) target = $region5
    $region4: #{tpu_custom_call.1} parent=1 // pred_region
      %19 = vsyncadd [#allocation3], 0
      %s20 = sshll.u32 %s0, 4
      %s21 = int_to_ptr.hbm [resolvable:$true] %s20
      %s22 = sshll.u32 [#allocation2], 4
      %s23 = int_to_ptr.vmem [resolvable:$true] %s22
      %28 = dma.hbm_to_vmem [thread:$0]  %s21, 128, %s23, [#allocation3], 64, 64, 4
    $region5: #{tpu_custom_call.1} parent=1 // pred_fallthru
      _
    // Predicated region
    $region6: #{tpu_custom_call.1} parent=1 // pred_check
      _
    $region7: #{tpu_custom_call.1} parent=1 // pred_check_branch
      %30 = sbr.rel (0) target = $region9
    $region8: #{tpu_custom_call.1} parent=1 // pred_region
      %32 = vsyncadd [#allocation5], 0
      %s33 = sshll.u32 %s1, 4
      %s34 = int_to_ptr.hbm [resolvable:$true] %s33
      %s35 = sshll.u32 [#allocation4], 4
      %s36 = int_to_ptr.vmem [resolvable:$true] %s35
      %41 = dma.hbm_to_vmem [thread:$0]  %s34, 128, %s36, [#allocation5], 64, 64, 4
    $region9: #{tpu_custom_call.1} parent=1 // pred_fallthru
      _
    // Predicated region
    $region10: #{tpu_custom_call.1} parent=1 // pred_check
      _
    $region11: #{tpu_custom_call.1} parent=1 // pred_check_branch
      %43 = sbr.rel (0) target = $region13
    $region12: #{tpu_custom_call.1} parent=1 // pred_region
      _
    $region13: #{tpu_custom_call.1} parent=1 // pred_fallthru
      _
    // Predicated region
    $region14: #{tpu_custom_call.1} parent=1 // pred_check
      _
    $region15: #{tpu_custom_call.1} parent=1 // pred_check_branch
      %45 = sbr.rel (0) target = $region17
    $region16: #{tpu_custom_call.1} parent=1 // pred_region
      _
    $region17: #{tpu_custom_call.1} parent=1 // pred_fallthru
      _
    // Predicated region
    $region18: #{tpu_custom_call.1} parent=1 // pred_check
      _
    $region19: #{tpu_custom_call.1} parent=1 // pred_check_branch
      %47 = sbr.rel (0) target = $region21
    $region20: #{tpu_custom_call.1} parent=1 // pred_region
      _
    $region21: #{tpu_custom_call.1} parent=1 // pred_fallthru
      _
    // Predicated region
    $region22: #{tpu_custom_call.1} parent=1 // pred_check
      _
    $region23: #{tpu_custom_call.1} parent=1 // pred_check_branch
      %49 = sbr.rel (0) target = $region25
    $region24: #{tpu_custom_call.1} parent=1 // pred_region
      %51 = vsyncadd [#allocation5], 0
      %s52 = sshll.u32 %s5, 4
      %s53 = int_to_ptr.hbm [resolvable:$true] %s52
      %s54 = sshll.u32 [#allocation6], 4
      %s55 = int_to_ptr.vmem [resolvable:$true] %s54
      %60 = dma.hbm_to_vmem [thread:$0]  %s53, 256, %s55, [#allocation5], 64, 64, 4
    $region25: #{tpu_custom_call.1} parent=1 // pred_fallthru
      _
    // Predicated region
    $region26: #{tpu_custom_call.1} parent=1 // pred_check
      _
    $region27: #{tpu_custom_call.1} parent=1 // pred_check_branch
      %62 = sbr.rel (0) target = $region29
    $region28: #{tpu_custom_call.1} parent=1 // pred_region
      _
    $region29: #{tpu_custom_call.1} parent=1 // pred_fallthru
      _
    // Predicated region
    $region30: #{tpu_custom_call.1} parent=1 // pred_check
      _
    $region31: #{tpu_custom_call.1} parent=1 // pred_check_branch
      %64 = sbr.rel (0) target = $region33
    $region32: #{tpu_custom_call.1} parent=1 // pred_region
      _
    $region33: #{tpu_custom_call.1} parent=1 // pred_fallthru
      _
    // Predicated region
    $region34: #{tpu_custom_call.1} parent=1 // pred_check
      _
    $region35: #{tpu_custom_call.1} parent=1 // pred_check_branch
      %66 = sbr.rel (0) target = $region37
    $region36: #{tpu_custom_call.1} parent=1 // pred_region
      _
    $region37: #{tpu_custom_call.1} parent=1 // pred_fallthru
      _
    // Predicated region
    $region38: #{tpu_custom_call.1} parent=1 // pred_check
      _
    $region39: #{tpu_custom_call.1} parent=1 // pred_check_branch
      %68 = sbr.rel (0) target = $region41
    $region40: #{tpu_custom_call.1} parent=1 // pred_region
      %70 = dma.done [#allocation3], 128
    $region41: #{tpu_custom_call.1} parent=1 // pred_fallthru
      _
    // Predicated region
    $region42: #{tpu_custom_call.1} parent=1 // pred_check
      _
    $region43: #{tpu_custom_call.1} parent=1 // pred_check_branch
      %72 = sbr.rel (0) target = $region45
    $region44: #{tpu_custom_call.1} parent=1 // pred_region
      %74 = dma.done [#allocation5], 128
    $region45: #{tpu_custom_call.1} parent=1 // pred_fallthru
      _
    // Predicated region
    $region46: #{tpu_custom_call.1} parent=1 // pred_check
      _
    $region47: #{tpu_custom_call.1} parent=1 // pred_check_branch
      %76 = sbr.rel (0) target = $region49
    $region48: #{tpu_custom_call.1} parent=1 // pred_region
      %78 = dma.done [#allocation5], 256
    $region49: #{tpu_custom_call.1} parent=1 // pred_fallthru
      _
    %v80 = vld [vmem:[#allocation2] sm:$0xf]
    %v81 = vld [vmem:[#allocation2 + $0x4] sm:$0xf]
    %v82 = vld [vmem:[#allocation4] sm:$0xf]
    %v83 = vld [vmem:[#allocation4 + $0x4] sm:$0xf]
    %v84 = vld [vmem:[%s2] sm:$0x1]
    %v86 = vperm.slane %v84, 0
    %v90 = vunpack.c.l.b16 %v80
    %v91 = vunpack.c.l.b16 %v81
    %v92 = vpack.c.b16 %v91, %v90
    %v95 = vunpack.c.l.b16 %v82
    %v96 = vunpack.c.l.b16 %v83
    %v97 = vpack.c.b16 %v96, %v95
    %vm99 = vcmask 130048
    %v101 = vsel %vm99, %v92, 0
    %103 = vmatpush.bf16.msra.mxu0 0
    %104 = vmatpush.bf16.msra.mxu0 0
    %105 = vmatpush.bf16.msra.mxu0 0
    %106 = vmatpush.bf16.msra.mxu0 0
    %107 = vmatpush.bf16.msra.mxu0 0
    %108 = vmatpush.bf16.msra.mxu0 0
    %109 = vmatpush.bf16.msra.mxu0 0
    %110 = vmatpush.bf16.msra.mxu0 %v97
    %111 = vmatmul.bf16.gmra.mxu0 %v101
    %v112 = vpop.f32.mrf.mxu0
    %v113 = vadd.f32 %v86, %v112
    %v114 = vpop.f32.mrf.mxu0
    %v115 = vadd.f32 %v86, %v114
    %116 = vdwg.mxu0
    %v117 = vmax.f32 %v113, 0.0
    %v118 = vmax.f32 %v115, 0.0
    %v119 = vld [vmem:[%s3] sm:$0xf]
    %v120 = vld [vmem:[%s3 + $0x4] sm:$0xf]
    %v121 = vld [vmem:[%s3 + $0x8] sm:$0xf]
    %v122 = vld [vmem:[%s3 + $0xc] sm:$0xf]
    %v123 = vld [vmem:[%s4] sm:$0x1]
    %v124 = vpack.c.bf16 %v118, %v117
    %v126 = vperm.slane %v123, 0
    %v132 = vunpack.c.l.b16 %v119
    %v133 = vunpack.c.l.b16 %v120
    %v134 = vunpack.c.l.b16 %v121
    %v135 = vunpack.c.l.b16 %v122
    %v136 = vpack.c.b16 %v133, %v132
    %v137 = vpack.c.b16 %v135, %v134
    %vm140 = vcmask 261120
    %v142 = vsel %vm140, %v124, 0
    %144 = vmatpush.bf16.msra.mxu0 0
    %145 = vmatpush.bf16.msra.mxu0 0
    %146 = vmatpush.bf16.msra.mxu0 0
    %147 = vmatpush.bf16.msra.mxu0 0
    %148 = vmatpush.bf16.msra.mxu0 0
    %149 = vmatpush.bf16.msra.mxu0 0
    %150 = vmatpush.bf16.msra.mxu0 %v137
    %151 = vmatpush.bf16.msra.mxu0 %v136
    %152 = vmatmul.bf16.gmra.mxu0 %v142
    %v153 = vpop.f32.mrf.mxu0
    %v154 = vadd.f32 %v126, %v153
    %v155 = vpop.f32.mrf.mxu0
    %v156 = vadd.f32 %v126, %v155
    %157 = vdwg.mxu0
    %v158 = vmax.f32 %v154, 0.0
    %v159 = vmax.f32 %v156, 0.0
    %v160 = vld [vmem:[#allocation6] sm:$0xf]
    %v161 = vld [vmem:[#allocation6 + $0x4] sm:$0xf]
    %v162 = vld [vmem:[#allocation6 + $0x8] sm:$0xf]
    %v163 = vld [vmem:[#allocation6 + $0xc] sm:$0xf]
    %v164 = vld [vmem:[%s6] sm:$0x1]
    %v165 = vpack.c.bf16 %v159, %v158
    %v167 = vperm.slane %v164, 0
    %v173 = vunpack.c.l.b16 %v160
    %v174 = vunpack.c.l.b16 %v161
    %v175 = vunpack.c.l.b16 %v162
    %v176 = vunpack.c.l.b16 %v163
    %v177 = vpack.c.b16 %v174, %v173
    %v178 = vpack.c.b16 %v176, %v175
    %v182 = vsel %vm140, %v165, 0
    %184 = vmatpush.bf16.msra.mxu0 0
    %185 = vmatpush.bf16.msra.mxu0 0
    %186 = vmatpush.bf16.msra.mxu0 0
    %187 = vmatpush.bf16.msra.mxu0 0
    %188 = vmatpush.bf16.msra.mxu0 0
    %189 = vmatpush.bf16.msra.mxu0 0
    %190 = vmatpush.bf16.msra.mxu0 %v178
    %191 = vmatpush.bf16.msra.mxu0 %v177
    %192 = vmatmul.bf16.gmra.mxu0 %v182
    %v193 = vpop.f32.mrf.mxu0
    %v194 = vadd.f32 %v167, %v193
    %v195 = vpop.f32.mrf.mxu0
    %v196 = vadd.f32 %v167, %v195
    %197 = vdwg.mxu0
    %v198 = vmax.f32 %v194, 0.0
    %v199 = vmax.f32 %v196, 0.0
    %v200 = vld [vmem:[%s7] sm:$0xf]
    %v201 = vld [vmem:[%s7 + $0x4] sm:$0xf]
    %v202 = vld [vmem:[%s7 + $0x8] sm:$0xf]
    %v203 = vld [vmem:[%s7 + $0xc] sm:$0xf]
    %v204 = vld [vmem:[%s8] sm:$0x1]
    %v205 = vpack.c.bf16 %v199, %v198
    %v207 = vperm.slane %v204, 0
    %v213 = vunpack.c.l.b16 %v200
    %v214 = vunpack.c.l.b16 %v201
    %v215 = vunpack.c.l.b16 %v202
    %v216 = vunpack.c.l.b16 %v203
    %v217 = vpack.c.b16 %v214, %v213
    %v218 = vpack.c.b16 %v216, %v215
    %v222 = vsel %vm140, %v205, 0
    %224 = vmatpush.bf16.msra.mxu0 0
    %225 = vmatpush.bf16.msra.mxu0 0
    %226 = vmatpush.bf16.msra.mxu0 0
    %227 = vmatpush.bf16.msra.mxu0 0
    %228 = vmatpush.bf16.msra.mxu0 0
    %229 = vmatpush.bf16.msra.mxu0 0
    %230 = vmatpush.bf16.msra.mxu0 %v218
    %231 = vmatpush.bf16.msra.mxu0 %v217
    %232 = vmatmul.bf16.gmra.mxu0 %v222
    %v233 = vpop.f32.mrf.mxu0
    %v234 = vadd.f32 %v207, %v233
    %v235 = vpop.f32.mrf.mxu0
    %v236 = vadd.f32 %v207, %v235
    %237 = vdwg.mxu0
    %vm238 = vcmask 64512
    %239 = vst.msk [vmem:[%s9] sm:$0xff] %vm238, %v234
    %240 = vst.msk [vmem:[%s9 + $0x8] sm:$0xff] %vm238, %v236
    // Predicated region
    $region50: #{tpu_custom_call.1} parent=1 // pred_check
      _
    $region51: #{tpu_custom_call.1} parent=1 // pred_check_branch
      %242 = sbr.rel (0) target = $region53
    $region52: #{tpu_custom_call.1} parent=1 // pred_region
      _
    $region53: #{tpu_custom_call.1} parent=1 // pred_fallthru
      _
    // Predicated region
    $region54: #{tpu_custom_call.1} parent=1 // pred_check
      _
    $region55: #{tpu_custom_call.1} parent=1 // pred_check_branch
      %244 = sbr.rel (0) target = $region57
    $region56: #{tpu_custom_call.1} parent=1 // pred_region
      _
    $region57: #{tpu_custom_call.1} parent=1 // pred_fallthru
      _
    %245 = vsyncpa [#allocation3], 1
    %246 = vsyncpa [#allocation5], 1

</llo_original>
